<compile_context>
chip_gen: v5e
topology: v5e:2x2
jax: 0.10.0
libtpu: 0.0.40
codegen_flags: <defaults>
</compile_context>

<pallas_src>
import functools

import jax
import jax.numpy as jnp
from jax.experimental import pallas as pl
from jax.experimental.pallas import tpu as pltpu


def _add_and_norm_kernel(x_ref, skip_ref, g_ref, b_ref, out_ref, *, eps, inv_dim):
    # x_ref/skip_ref/out_ref: (block_rows, dim) VMEM tiles
    # g_ref/b_ref:            (1, dim) f32 VMEM tiles (LayerNorm affine params)
    s = x_ref[...].astype(jnp.float32) + skip_ref[...].astype(jnp.float32)

    # One pass over s for both first and second moments (f32 accumulation).
    row_sum = jnp.sum(s, axis=-1, keepdims=True)
    row_sumsq = jnp.sum(s * s, axis=-1, keepdims=True)
    mean = row_sum * inv_dim
    # Biased variance (divide by N), matching torch.nn.LayerNorm.
    var = row_sumsq * inv_dim - mean * mean
    inv = jax.lax.rsqrt(var + eps)

    # y = (s - mean) * inv * gamma + beta, rewritten as two broadcast FMAs so
    # no (rows, dim) `centered` temporary is materialized.
    a = inv * g_ref[...]                       # (rows, dim)
    y = s * a + (b_ref[...] - mean * a)        # (rows, dim)
    out_ref[...] = y.astype(out_ref.dtype)


def add_and_norm(x, skip, gamma, beta, *, eps=1e-5,
                 target_tile_bytes=2 * 1024 * 1024):
    """Pallas equivalent of AddAndNorm.forward: LayerNorm(x + skip_conn)."""
    assert x.shape == skip.shape, (x.shape, skip.shape)
    orig_shape = x.shape
    dim = orig_shape[-1]
    assert gamma.shape == (dim,) and beta.shape == (dim,)

    xf = x.reshape(-1, dim)
    sf = skip.reshape(-1, dim)
    n = xf.shape[0]

    # Row-tile size from a per-buffer VMEM byte budget, aligned to the dtype's
    # sublane multiple.  2 buffers x (x + skip + out) x target_tile_bytes
    # stays around ~12 MiB, which fits every generation's scoped VMEM.
    itemsize = jnp.dtype(x.dtype).itemsize
    sublane = max(8, 32 // itemsize)           # 8 f32, 16 bf16, 32 int8
    br = target_tile_bytes // (dim * itemsize)
    br = max(sublane, (br // sublane) * sublane)
    if br >= n:
        br = n  # single full-extent block (legal even if n is not 8-aligned)
    # else: keep the sublane-aligned tile; the last grid step is a ragged block
    # (padded reads, out-of-bounds writes dropped) — no jnp.pad / slice copies.

    # One-time O(dim) cast so the kernel never re-casts the affine params.
    g2 = gamma.astype(jnp.float32).reshape(1, dim)
    b2 = beta.astype(jnp.float32).reshape(1, dim)

    grid = (pl.cdiv(n, br),)
    kernel = functools.partial(_add_and_norm_kernel, eps=eps, inv_dim=1.0 / dim)

    out = pl.pallas_call(
        kernel,
        out_shape=jax.ShapeDtypeStruct((n, dim), x.dtype),
        grid_spec=pl.GridSpec(
            grid=grid,
            in_specs=[
                pl.BlockSpec((br, dim), lambda i: (i, 0)),   # x tile
                pl.BlockSpec((br, dim), lambda i: (i, 0)),   # skip tile
                pl.BlockSpec((1, dim), lambda i: (0, 0)),    # gamma (f32)
                pl.BlockSpec((1, dim), lambda i: (0, 0)),    # beta  (f32)
            ],
            out_specs=pl.BlockSpec((br, dim), lambda i: (i, 0)),
        ),
        compiler_params=pltpu.CompilerParams(
            dimension_semantics=("parallel",),
            vmem_limit_bytes=32 * 1024 * 1024,
        ),
    )(xf, sf, g2, b2)

    return out.reshape(orig_shape)


if __name__ == "__main__":
    # Small shapes consistent with the module: (batch, seq, n_embeddings).
    batch, seq, n_embeddings = 2, 8, 128

    key = jax.random.PRNGKey(0)
    k_x, k_skip = jax.random.split(key)

    x = jax.random.normal(k_x, (batch, seq, n_embeddings), dtype=jnp.float32)
    skip = jax.random.normal(k_skip, (batch, seq, n_embeddings),
                             dtype=jnp.float32)

    # nn.LayerNorm default init: weight=1, bias=0, eps=1e-5.
    gamma = jnp.ones((n_embeddings,), dtype=jnp.float32)
    beta = jnp.zeros((n_embeddings,), dtype=jnp.float32)

    out = add_and_norm(x, skip, gamma, beta)
    out = jax.block_until_ready(out)

    # Pure-JAX reference (matches torch.nn.LayerNorm semantics).
    s = x + skip
    mean = jnp.mean(s, axis=-1, keepdims=True)
    var = jnp.mean((s - mean) ** 2, axis=-1, keepdims=True)
    ref = (s - mean) * jax.lax.rsqrt(var + 1e-5) * gamma + beta

    assert out.shape == (batch, seq, n_embeddings), out.shape
    assert jnp.allclose(out, ref, atol=1e-5, rtol=1e-5), (
        "mismatch vs reference add+layernorm")

    print("KERNEL_OK")
</pallas_src>

<mosaic_0001>
module attributes {stable_mosaic.version = 11 : i64} {
  func.func @_add_and_norm_kernel(%arg0: i32, %arg1: memref<16x128xf32, #tpu.memory_space<vmem>>, %arg2: memref<16x128xf32, #tpu.memory_space<vmem>>, %arg3: memref<1x128xf32, #tpu.memory_space<vmem>>, %arg4: memref<1x128xf32, #tpu.memory_space<vmem>>, %arg5: memref<16x128xf32, #tpu.memory_space<vmem>>) attributes {dimension_semantics = [#tpu.dimension_semantics<parallel>], iteration_bounds = array<i64: 1>, scalar_prefetch = 0 : i64, scratch_operands = 0 : i64, tpu.core_type = #tpu.core_type<tc>, window_params = [{transform_indices = @transform_0, window_bounds = array<i64: 16, 128>}, {transform_indices = @transform_1, window_bounds = array<i64: 16, 128>}, {pipeline_mode = #tpu.pipeline_mode<synchronous>, transform_indices = @transform_2, window_bounds = array<i64: 1, 128>}, {pipeline_mode = #tpu.pipeline_mode<synchronous>, transform_indices = @transform_3, window_bounds = array<i64: 1, 128>}, {transform_indices = @transform_4, window_bounds = array<i64: 16, 128>}]} {
    %c0 = arith.constant 0 : index
    %c0_0 = arith.constant 0 : index
    %0 = vector.load %arg1[%c0, %c0_0] : memref<16x128xf32, #tpu.memory_space<vmem>>, vector<16x128xf32>
    %c0_1 = arith.constant 0 : index
    %c0_2 = arith.constant 0 : index
    %1 = vector.load %arg2[%c0_1, %c0_2] : memref<16x128xf32, #tpu.memory_space<vmem>>, vector<16x128xf32>
    %2 = arith.addf %0, %1 : vector<16x128xf32>
    %cst = arith.constant dense<0.000000e+00> : vector<16xf32>
    %3 = vector.multi_reduction <add>, %2, %cst [1] : vector<16x128xf32> to vector<16xf32>
    %4 = vector.shape_cast %3 : vector<16xf32> to vector<16x1xf32>
    %5 = arith.mulf %2, %2 : vector<16x128xf32>
    %cst_3 = arith.constant dense<0.000000e+00> : vector<16xf32>
    %6 = vector.multi_reduction <add>, %5, %cst_3 [1] : vector<16x128xf32> to vector<16xf32>
    %7 = vector.shape_cast %6 : vector<16xf32> to vector<16x1xf32>
    %cst_4 = arith.constant 7.812500e-03 : f32
    %8 = vector.broadcast %cst_4 : f32 to vector<16x1xf32>
    %9 = arith.mulf %4, %8 : vector<16x1xf32>
    %cst_5 = arith.constant 7.812500e-03 : f32
    %10 = vector.broadcast %cst_5 : f32 to vector<16x1xf32>
    %11 = arith.mulf %7, %10 : vector<16x1xf32>
    %12 = arith.mulf %9, %9 : vector<16x1xf32>
    %13 = arith.subf %11, %12 : vector<16x1xf32>
    %cst_6 = arith.constant 9.99999974E-6 : f32
    %14 = vector.broadcast %cst_6 : f32 to vector<16x1xf32>
    %15 = arith.addf %13, %14 : vector<16x1xf32>
    %16 = math.rsqrt %15 : vector<16x1xf32>
    %c0_7 = arith.constant 0 : index
    %c0_8 = arith.constant 0 : index
    %17 = vector.load %arg3[%c0_7, %c0_8] : memref<1x128xf32, #tpu.memory_space<vmem>>, vector<1x128xf32>
    %18 = vector.broadcast %16 : vector<16x1xf32> to vector<16x128xf32>
    %19 = vector.broadcast %17 : vector<1x128xf32> to vector<16x128xf32>
    %20 = arith.mulf %18, %19 : vector<16x128xf32>
    %21 = arith.mulf %2, %20 : vector<16x128xf32>
    %c0_9 = arith.constant 0 : index
    %c0_10 = arith.constant 0 : index
    %22 = vector.load %arg4[%c0_9, %c0_10] : memref<1x128xf32, #tpu.memory_space<vmem>>, vector<1x128xf32>
    %23 = vector.broadcast %9 : vector<16x1xf32> to vector<16x128xf32>
    %24 = arith.mulf %23, %20 : vector<16x128xf32>
    %25 = vector.broadcast %22 : vector<1x128xf32> to vector<16x128xf32>
    %26 = arith.subf %25, %24 : vector<16x128xf32>
    %27 = arith.addf %21, %26 : vector<16x128xf32>
    %c0_11 = arith.constant 0 : index
    %c0_12 = arith.constant 0 : index
    %28 = vector.load %arg5[%c0_11, %c0_12] : memref<16x128xf32, #tpu.memory_space<vmem>>, vector<16x128xf32>
    tpu.vector_store %arg5[%c0_11, %c0_12], %27 {strides = array<i32>} : memref<16x128xf32, #tpu.memory_space<vmem>>, vector<16x128xf32>,
    return
  }
  func.func @transform_0(%arg0: i32) -> (i32, i32) {
    %c0_i32 = arith.constant 0 : i32
    %c0_i32_0 = arith.constant 0 : i32
    return %arg0, %c0_i32 : i32, i32
  }
  func.func @transform_1(%arg0: i32) -> (i32, i32) {
    %c0_i32 = arith.constant 0 : i32
    %c0_i32_0 = arith.constant 0 : i32
    return %arg0, %c0_i32 : i32, i32
  }
  func.func @transform_2(%arg0: i32) -> (i32, i32) {
    %c0_i32 = arith.constant 0 : i32
    %c0_i32_0 = arith.constant 0 : i32
    %c0_i32_1 = arith.constant 0 : i32
    return %c0_i32, %c0_i32_0 : i32, i32
  }
  func.func @transform_3(%arg0: i32) -> (i32, i32) {
    %c0_i32 = arith.constant 0 : i32
    %c0_i32_0 = arith.constant 0 : i32
    %c0_i32_1 = arith.constant 0 : i32
    return %c0_i32, %c0_i32_0 : i32, i32
  }
  func.func @transform_4(%arg0: i32) -> (i32, i32) {
    %c0_i32 = arith.constant 0 : i32
    %c0_i32_0 = arith.constant 0 : i32
    return %arg0, %c0_i32 : i32, i32
  }
}

</mosaic_0001>

<llo_original>
// kernel: tpu_custom_call.1
$region0: #{tpu_custom_call.1}
  #allocation0 [shape = 'u32[]', space=smem, size = 0x4, offset = 0x4, fixed_abs, tag = 'smem constant byte address 0x4 - core index']
  #allocation1 [shape = 'u32[72,128]{1,0:T(1,128)}', space=vmem, size = 0x9000, scoped, tag = 'internal scratch']
  %s0 = inlined_call_operand.hbm [shape: f32[16,128], index: 0, kind: input, shape index: {}]
  %s1 = inlined_call_operand.hbm [shape: f32[16,128], index: 1, kind: input, shape index: {}]
  %s2 = inlined_call_operand.vmem [shape: f32[1,128], index: 2, kind: input, shape index: {}]
  %s3 = inlined_call_operand.vmem [shape: f32[1,128], index: 3, kind: input, shape index: {}]
  %s4 = inlined_call_operand.hbm [shape: f32[16,128], index: 4, kind: output, shape index: {}]
  %s5 = sld [smem:[#allocation0]]
  $region34: #{tpu_custom_call.1} parent=0
    _
  %s7 = ssub.s32 1, %s5
  %s8 = scalar_select 0, %s7, %s5
  $region1: #{tpu_custom_call.1} parent=0
    #allocation2 [shape = 'u8[8192]{0}', space=vmem, size = 0x2000, scoped, tag = 'input window, operand 0, single buffered']
    #allocation3 [shape = 's32[1]{0}', space=sflag, size = 0x4, scoped, tag = 'scoped memory for tpu_custom_call.1']
    #allocation4 [shape = 's32[1]{0}', space=sflag, size = 0x4, scoped, tag = 'scoped memory for tpu_custom_call.1']
    #allocation5 [shape = 'u8[8192]{0}', space=vmem, size = 0x2000, scoped, tag = 'input window, operand 1, single buffered']
    #allocation6 [shape = 's32[1]{0}', space=sflag, size = 0x4, scoped, tag = 'scoped memory for tpu_custom_call.1']
    #allocation7 [shape = 'u8[8192]{0}', space=vmem, size = 0x2000, scoped, tag = 'output window, operand 0, single buffered']
    %9 = vsyncpa [#allocation3], 0
    %10 = vsyncpa [#allocation6], 0
    %11 = vsyncpa [#allocation4], 0
    // Predicated region
    $region2: #{tpu_custom_call.1} parent=1 // pred_check
      _
    $region3: #{tpu_custom_call.1} parent=1 // pred_check_branch
      %13 = sbr.rel (0) target = $region5
    $region4: #{tpu_custom_call.1} parent=1 // pred_region
      %15 = vsyncadd [#allocation3], 0
      %s16 = sshll.u32 %s0, 4
      %s17 = int_to_ptr.hbm [resolvable:$true] %s16
      %s18 = sshll.u32 [#allocation2], 4
      %s19 = int_to_ptr.vmem [resolvable:$true] %s18
      %24 = dma.hbm_to_vmem [thread:$0]  %s17, 256, %s19, [#allocation3], 128, 128, 8
    $region5: #{tpu_custom_call.1} parent=1 // pred_fallthru
      _
    // Predicated region
    $region6: #{tpu_custom_call.1} parent=1 // pred_check
      _
    $region7: #{tpu_custom_call.1} parent=1 // pred_check_branch
      %26 = sbr.rel (0) target = $region9
    $region8: #{tpu_custom_call.1} parent=1 // pred_region
      %28 = vsyncadd [#allocation6], 0
      %s29 = sshll.u32 %s1, 4
      %s30 = int_to_ptr.hbm [resolvable:$true] %s29
      %s31 = sshll.u32 [#allocation5], 4
      %s32 = int_to_ptr.vmem [resolvable:$true] %s31
      %37 = dma.hbm_to_vmem [thread:$0]  %s30, 256, %s32, [#allocation6], 128, 128, 8
    $region9: #{tpu_custom_call.1} parent=1 // pred_fallthru
      _
    // Predicated region
    $region10: #{tpu_custom_call.1} parent=1 // pred_check
      _
    $region11: #{tpu_custom_call.1} parent=1 // pred_check_branch
      %39 = sbr.rel (0) target = $region13
    $region12: #{tpu_custom_call.1} parent=1 // pred_region
      _
    $region13: #{tpu_custom_call.1} parent=1 // pred_fallthru
      _
    // Predicated region
    $region14: #{tpu_custom_call.1} parent=1 // pred_check
      _
    $region15: #{tpu_custom_call.1} parent=1 // pred_check_branch
      %41 = sbr.rel (0) target = $region17
    $region16: #{tpu_custom_call.1} parent=1 // pred_region
      _
    $region17: #{tpu_custom_call.1} parent=1 // pred_fallthru
      _
    // Predicated region
    $region18: #{tpu_custom_call.1} parent=1 // pred_check
      _
    $region19: #{tpu_custom_call.1} parent=1 // pred_check_branch
      %43 = sbr.rel (0) target = $region21
    $region20: #{tpu_custom_call.1} parent=1 // pred_region
      %45 = dma.done [#allocation3], 256
    $region21: #{tpu_custom_call.1} parent=1 // pred_fallthru
      _
    // Predicated region
    $region22: #{tpu_custom_call.1} parent=1 // pred_check
      _
    $region23: #{tpu_custom_call.1} parent=1 // pred_check_branch
      %47 = sbr.rel (0) target = $region25
    $region24: #{tpu_custom_call.1} parent=1 // pred_region
      %49 = dma.done [#allocation6], 256
    $region25: #{tpu_custom_call.1} parent=1 // pred_fallthru
      _
    %v50 = vld [vmem:[#allocation2] sm:$0xff]
    %v51 = vld [vmem:[#allocation2 + $0x8] sm:$0xff]
    %v52 = vld [vmem:[#allocation5] sm:$0xff]
    %v53 = vld [vmem:[#allocation5 + $0x8] sm:$0xff]
    %v54 = vadd.f32 %v50, %v52
    %v55 = vadd.f32 %v51, %v53
    %56 = vadd.xlane.f32.xlu0 %v54
    %v57 = vpop.xlane.xlu0 %56
    %58 = vadd.xlane.f32.xlu0 %v55
    %v59 = vpop.xlane.xlu0 %58
    %v60 = vmul.f32 %v54, %v54
    %v61 = vmul.f32 %v55, %v55
    %62 = vadd.xlane.f32.xlu0 %v60
    %v63 = vpop.xlane.xlu0 %62
    %64 = vadd.xlane.f32.xlu0 %v61
    %v65 = vpop.xlane.xlu0 %64
    %v66 = vmul.f32 %v57, 0.0078125
    %v67 = vmul.f32 %v59, 0.0078125
    %v68 = vmul.f32 %v63, 0.0078125
    %v69 = vmul.f32 %v65, 0.0078125
    %v70 = vmul.f32 %v66, %v66
    %v71 = vmul.f32 %v67, %v67
    %v72 = vsub.f32 %v68, %v70
    %v73 = vsub.f32 %v69, %v71
    %v74 = vadd.f32 %v72, 1e-05
    %v75 = vadd.f32 %v73, 1e-05
    %v76 = vrsqrt.pop %v74
    %v77 = vmul.f32 %v76, %v74
    %v78 = vmul.f32 %v77, %v76
    %v79 = vmul.f32 0.5, %v78
    %v80 = vsub.f32 1.5, %v79
    %v81 = vmul.f32 %v76, %v80
    %vm82 = vweird.f32 %v74
    %vm83 = vweird.f32 %v76
    %vm84 = vmor %vm82, %vm83
    %v85 = vsel %vm84, %v76, %v81
    %v86 = vrsqrt.pop %v75
    %v87 = vmul.f32 %v86, %v75
    %v88 = vmul.f32 %v87, %v86
    %v89 = vmul.f32 0.5, %v88
    %v90 = vsub.f32 1.5, %v89
    %v91 = vmul.f32 %v86, %v90
    %vm92 = vweird.f32 %v75
    %vm93 = vweird.f32 %v86
    %vm94 = vmor %vm92, %vm93
    %v95 = vsel %vm94, %v86, %v91
    %v96 = vld [vmem:[%s2] sm:$0x1]
    %v98 = vperm.slane %v96, 0
    %v100 = vmul.f32 %v85, %v98
    %v101 = vmul.f32 %v95, %v98
    %v102 = vmul.f32 %v54, %v100
    %v103 = vmul.f32 %v55, %v101
    %v104 = vld [vmem:[%s3] sm:$0x1]
    %v105 = vmul.f32 %v66, %v100
    %v106 = vmul.f32 %v67, %v101
    %v108 = vperm.slane %v104, 0
    %v110 = vsub.f32 %v108, %v105
    %v111 = vsub.f32 %v108, %v106
    %v112 = vadd.f32 %v102, %v110
    %v113 = vadd.f32 %v103, %v111
    %114 = vst [vmem:[#allocation7] sm:$0xff] %v112
    %115 = vst [vmem:[#allocation7 + $0x8] sm:$0xff] %v113
    // Predicated region
    $region26: #{tpu_custom_call.1} parent=1 // pred_check
      _
    $region27: #{tpu_custom_call.1} parent=1 // pred_check_branch
      %117 = sbr.rel (0) target = $region29
    $region28: #{tpu_custom_call.1} parent=1 // pred_region
      %119 = vsyncadd [#allocation4], 0
      %s120 = sshll.u32 [#allocation7], 4
      %s121 = int_to_ptr.vmem [resolvable:$true] %s120
      %s122 = sshll.u32 %s4, 4
      %s123 = int_to_ptr.hbm [resolvable:$true] %s122
      %128 = dma.vmem_to_hbm [thread:$0]  %s121, 256, %s123, [#allocation4], 128, 128, 8
    $region29: #{tpu_custom_call.1} parent=1 // pred_fallthru
      _
    // Predicated region
    $region30: #{tpu_custom_call.1} parent=1 // pred_check
      _
    $region31: #{tpu_custom_call.1} parent=1 // pred_check_branch
      %130 = sbr.rel (0) target = $region33
    $region32: #{tpu_custom_call.1} parent=1 // pred_region
      %132 = dma.done [#allocation4], 256
    $region33: #{tpu_custom_call.1} parent=1 // pred_fallthru
      _
    %133 = vsyncpa [#allocation3], 1
    %134 = vsyncpa [#allocation6], 1
    %135 = vsyncpa [#allocation4], 1

</llo_original>
